<compile_context>
chip_gen: v6e
topology: v6e:2x2x1
jax: 0.10.0
libtpu: 0.0.40
codegen_flags: <defaults>
</compile_context>

<pallas_src>
import jax
import jax.numpy as jnp
import numpy as np
from jax.experimental import pallas as pl
from jax.experimental.pallas import tpu as pltpu

LEAKY_SLOPE = 0.2
BN_EPS = 1e-5


# --------------------------------------------------------------------------
# Kernel
# --------------------------------------------------------------------------
def _layer(x2d, ball, p_ref, bias_row, WC):
    """One Conv3x3(reflect) + BN(affine, folded) + LeakyReLU on a (H, W*C) slab.

    x2d:      (H, W*Cin)  activation, W and C flattened into the lane dim
    ball:     (W*Cin, 3*WC)  banded weights, the 3 kh taps concatenated along
              columns; reflect-W padding and BN scale already folded in
    p_ref:    (3, H, H)  row-shift matrices with reflect-H padding baked in
              (p[1] is the identity and is skipped)
    bias_row: (1, WC)    BN bias tiled per-W
    """
    # Single MXU matmul computes all three kh "bands" at once: (H, 3*WC).
    t = jnp.dot(x2d, ball, preferred_element_type=jnp.float32)
    # Combine the bands with reflect-H row shifts (tiny (H,H) matmuls on MXU,
    # lane slices below are 128-aligned -> no relayout).
    acc = (jnp.dot(p_ref[0], t[:, :WC], preferred_element_type=jnp.float32)
           + t[:, WC:2 * WC]
           + jnp.dot(p_ref[2], t[:, 2 * WC:], preferred_element_type=jnp.float32))
    y = acc + bias_row                              # BatchNorm bias (eval, folded)
    return jnp.where(y >= 0.0, y, LEAKY_SLOPE * y)  # LeakyReLU(0.2); Dropout2d = id (eval)


def _conv_block_kernel(x_ref, bw1_ref, p_ref, bias1_ref, bw2_ref, bias2_ref, o_ref):
    """Both ConvBlock layers for one batch element; h stays in VMEM/vregs."""
    WC = o_ref.shape[-1]                 # W * Cout (lane-dense output width)
    x2d = x_ref[0]                       # (H, W*Cin)
    h = _layer(x2d, bw1_ref[...], p_ref, bias1_ref[...], WC)   # layer 1
    y = _layer(h, bw2_ref[...], p_ref, bias2_ref[...], WC)     # layer 2
    o_ref[0] = y                         # dense (H, W*Cout) store, lane width 128


# --------------------------------------------------------------------------
# Wrapper-side weight preprocessing (reflect-W + BN scale folded into weights)
# --------------------------------------------------------------------------
def _reflect(i, n):
    if i < 0:
        return -i
    if i >= n:
        return 2 * n - 2 - i
    return i


def _make_banded_weights(wt, W):
    """wt: (3, 3, Cin, Cout) conv weights (BN scale already folded).

    Returns (W*Cin, 3*W*Cout): for each kh a banded matrix B_kh with
      B_kh[wi*Cin+ci, w*Cout+co] = sum_{kw: reflect(w+kw-1)==wi} wt[kh,kw,ci,co]
    so x2d @ B_kh performs the kw contraction including reflect-W padding.
    """
    _, _, Cin, Cout = wt.shape
    bands = []
    for kh in range(3):
        B4 = jnp.zeros((W, Cin, W, Cout), wt.dtype)
        for kw in range(3):
            sel = np.zeros((W, W), np.float32)
            for w in range(W):
                sel[_reflect(w + kw - 1, W), w] = 1.0   # += via accumulation below
            B4 = B4 + jnp.einsum("uw,io->uiwo", jnp.asarray(sel), wt[kh, kw])
        bands.append(B4.reshape(W * Cin, W * Cout))
    return jnp.concatenate(bands, axis=1)               # (W*Cin, 3*W*Cout)


def _make_row_shift(H):
    """(3, H, H) permutation matrices implementing the reflect-H row shifts."""
    P = np.zeros((3, H, H), np.float32)
    for kh in range(3):
        for h in range(H):
            P[kh, h, _reflect(h + kh - 1, H)] = 1.0
    return jnp.asarray(P)


# --------------------------------------------------------------------------
# Forward
# --------------------------------------------------------------------------
def conv_block_forward(x_nchw, params):
    """ConvBlock.forward: NCHW in, NCHW out (PyTorch convention)."""
    N, Cin, H, W = x_nchw.shape
    Cout = params["w1"].shape[-1]
    WC = W * Cout

    # NCHW -> NHWC -> (N, H, W*Cin): lane-dense layout (free row-major reshape).
    x2d = jnp.transpose(x_nchw, (0, 2, 3, 1)).reshape(N, H, W * Cin)

    # Fold BN scale into the conv weights; bake reflect padding into matrices.
    w1f = params["w1"] * params["s1"].reshape(1, 1, 1, Cout)
    w2f = params["w2"] * params["s2"].reshape(1, 1, 1, Cout)
    bw1 = _make_banded_weights(w1f, W)                 # (W*Cin,  3*W*Cout)
    bw2 = _make_banded_weights(w2f, W)                 # (W*Cout, 3*W*Cout)
    p = _make_row_shift(H)                             # (3, H, H)
    bias1 = jnp.tile(params["b1"].reshape(1, Cout), (1, W))   # (1, W*Cout)
    bias2 = jnp.tile(params["b2"].reshape(1, Cout), (1, W))

    out = pl.pallas_call(
        _conv_block_kernel,
        out_shape=jax.ShapeDtypeStruct((N, H, WC), jnp.float32),
        grid_spec=pltpu.PrefetchScalarGridSpec(
            num_scalar_prefetch=0,
            grid=(N,),
            in_specs=[
                pl.BlockSpec((1, H, W * Cin), lambda n: (n, 0, 0)),
                pl.BlockSpec((W * Cin, 3 * WC), lambda n: (0, 0)),
                pl.BlockSpec((3, H, H), lambda n: (0, 0, 0)),
                pl.BlockSpec((1, WC), lambda n: (0, 0)),
                pl.BlockSpec((WC, 3 * WC), lambda n: (0, 0)),
                pl.BlockSpec((1, WC), lambda n: (0, 0)),
            ],
            out_specs=pl.BlockSpec((1, H, WC), lambda n: (n, 0, 0)),
        ),
        compiler_params=pltpu.CompilerParams(
            dimension_semantics=("parallel",)),
    )(x2d, bw1, p, bias1, bw2, bias2)

    # (N, H, W*Cout) -> (N, H, W, Cout) is a free reshape; transpose back to NCHW.
    return jnp.transpose(out.reshape(N, H, W, Cout), (0, 3, 1, 2))


# --------------------------------------------------------------------------
# Parameter init (deterministic; shapes match ConvBlock.__init__)
# --------------------------------------------------------------------------
def init_conv_block_params(key, in_channels, out_channels):
    ks = jax.random.split(key, 10)

    def conv_w(k, cin, cout):
        bound = 1.0 / np.sqrt(cin * 9)
        return jax.random.uniform(k, (3, 3, cin, cout), jnp.float32, -bound, bound)

    def bn(k0, k1, k2, k3, c):
        gamma = 1.0 + 0.1 * jax.random.normal(k0, (c,), jnp.float32)
        beta = 0.1 * jax.random.normal(k1, (c,), jnp.float32)
        rmean = 0.1 * jax.random.normal(k2, (c,), jnp.float32)
        rvar = 1.0 + 0.1 * jax.random.uniform(k3, (c,), jnp.float32)
        scale = gamma / jnp.sqrt(rvar + BN_EPS)
        bias = beta - rmean * scale
        return scale, bias

    w1 = conv_w(ks[0], in_channels, out_channels)
    s1, b1 = bn(ks[1], ks[2], ks[3], ks[4], out_channels)
    w2 = conv_w(ks[5], out_channels, out_channels)
    s2, b2 = bn(ks[6], ks[7], ks[8], ks[9], out_channels)   # fixed: ks[9] is a key
    return dict(w1=w1, s1=s1, b1=b1, w2=w2, s2=s2, b2=b2)


# ---------------- pure-JAX reference (independent path, for the check) -------
def _ref_layer(x_nhwc, w, scale, bias):
    N, H, W, Cin = x_nhwc.shape
    xp = jnp.pad(x_nhwc, ((0, 0), (1, 1), (1, 1), (0, 0)), mode="reflect")
    out = jnp.zeros((N, H, W, w.shape[-1]), jnp.float32)
    for kh in range(3):
        for kw in range(3):
            out = out + jnp.einsum("nhwc,co->nhwo",
                                   xp[:, kh:kh + H, kw:kw + W, :], w[kh, kw])
    y = out * scale.reshape(1, 1, 1, -1) + bias.reshape(1, 1, 1, -1)
    return jnp.where(y >= 0.0, y, LEAKY_SLOPE * y)


def _ref_forward(x_nchw, params):
    x = jnp.transpose(x_nchw, (0, 2, 3, 1))
    h = _ref_layer(x, params["w1"], params["s1"], params["b1"])
    y = _ref_layer(h, params["w2"], params["s2"], params["b2"])
    return jnp.transpose(y, (0, 3, 1, 2))


if __name__ == "__main__":
    key = jax.random.PRNGKey(0)
    kx, kp = jax.random.split(key)

    N, C_IN, C_OUT, H, W = 2, 4, 8, 16, 16
    x = jax.random.normal(kx, (N, C_IN, H, W), jnp.float32)   # NCHW, like PyTorch
    params = init_conv_block_params(kp, C_IN, C_OUT)

    out = jax.block_until_ready(conv_block_forward(x, params))

    ref = _ref_forward(x, params)
    np.testing.assert_allclose(np.asarray(out), np.asarray(ref),
                               rtol=1e-4, atol=1e-4)
    assert out.shape == (N, C_OUT, H, W)
    print("KERNEL_OK")
</pallas_src>

<mosaic_0001>
module attributes {stable_mosaic.version = 11 : i64} {
  func.func @_conv_block_kernel(%arg0: i32, %arg1: memref<1x16x64xf32, #tpu.memory_space<vmem>>, %arg2: memref<64x384xf32, #tpu.memory_space<vmem>>, %arg3: memref<3x16x16xf32, #tpu.memory_space<vmem>>, %arg4: memref<1x128xf32, #tpu.memory_space<vmem>>, %arg5: memref<128x384xf32, #tpu.memory_space<vmem>>, %arg6: memref<1x128xf32, #tpu.memory_space<vmem>>, %arg7: memref<1x16x128xf32, #tpu.memory_space<vmem>>) attributes {dimension_semantics = [#tpu.dimension_semantics<parallel>], iteration_bounds = array<i64: 2>, scalar_prefetch = 0 : i64, scratch_operands = 0 : i64, tpu.core_type = #tpu.core_type<tc>, window_params = [{transform_indices = @transform_0, window_bounds = array<i64: 1, 16, 64>}, {pipeline_mode = #tpu.pipeline_mode<synchronous>, transform_indices = @transform_1, window_bounds = array<i64: 64, 384>}, {pipeline_mode = #tpu.pipeline_mode<synchronous>, transform_indices = @transform_2, window_bounds = array<i64: 3, 16, 16>}, {pipeline_mode = #tpu.pipeline_mode<synchronous>, transform_indices = @transform_3, window_bounds = array<i64: 1, 128>}, {pipeline_mode = #tpu.pipeline_mode<synchronous>, transform_indices = @transform_4, window_bounds = array<i64: 128, 384>}, {pipeline_mode = #tpu.pipeline_mode<synchronous>, transform_indices = @transform_5, window_bounds = array<i64: 1, 128>}, {transform_indices = @transform_6, window_bounds = array<i64: 1, 16, 128>}]} {
    %c0 = arith.constant 0 : index
    %c0_0 = arith.constant 0 : index
    %c0_1 = arith.constant 0 : index
    %0 = vector.load %arg1[%c0, %c0_0, %c0_1] : memref<1x16x64xf32, #tpu.memory_space<vmem>>, vector<1x16x64xf32>
    %1 = vector.shape_cast %0 : vector<1x16x64xf32> to vector<16x64xf32>
    %c0_2 = arith.constant 0 : index
    %c0_3 = arith.constant 0 : index
    %2 = vector.load %arg2[%c0_2, %c0_3] : memref<64x384xf32, #tpu.memory_space<vmem>>, vector<64x384xf32>
    %c0_4 = arith.constant 0 : index
    %c0_5 = arith.constant 0 : index
    %3 = vector.load %arg4[%c0_4, %c0_5] : memref<1x128xf32, #tpu.memory_space<vmem>>, vector<1x128xf32>
    %cst = arith.constant dense<0.000000e+00> : vector<16x384xf32>
    %4 = tpu.matmul %1, %2, %cst {dimension_numbers = #tpu.dot_dimension_numbers<[1], [0], [0], [1], [0, 0, 1, 1], [], []>} : vector<16x64xf32>, vector<64x384xf32>, vector<16x384xf32> -> vector<16x384xf32>
    %c0_6 = arith.constant 0 : index
    %c0_7 = arith.constant 0 : index
    %c0_8 = arith.constant 0 : index
    %5 = vector.load %arg3[%c0_6, %c0_7, %c0_8] : memref<3x16x16xf32, #tpu.memory_space<vmem>>, vector<1x16x16xf32>
    %6 = vector.shape_cast %5 : vector<1x16x16xf32> to vector<16x16xf32>
    %7 = vector.extract_strided_slice %4 {offsets = [0, 0], sizes = [16, 128], strides = [1, 1]} : vector<16x384xf32> to vector<16x128xf32>
    %cst_9 = arith.constant dense<0.000000e+00> : vector<16x128xf32>
    %8 = tpu.matmul %6, %7, %cst_9 {dimension_numbers = #tpu.dot_dimension_numbers<[1], [0], [0], [1], [0, 0, 1, 1], [], []>} : vector<16x16xf32>, vector<16x128xf32>, vector<16x128xf32> -> vector<16x128xf32>
    %9 = vector.extract_strided_slice %4 {offsets = [0, 128], sizes = [16, 128], strides = [1, 1]} : vector<16x384xf32> to vector<16x128xf32>
    %10 = arith.addf %8, %9 : vector<16x128xf32>
    %c2 = arith.constant 2 : index
    %c0_10 = arith.constant 0 : index
    %c0_11 = arith.constant 0 : index
    %11 = vector.load %arg3[%c2, %c0_10, %c0_11] : memref<3x16x16xf32, #tpu.memory_space<vmem>>, vector<1x16x16xf32>
    %12 = vector.shape_cast %11 : vector<1x16x16xf32> to vector<16x16xf32>
    %13 = vector.extract_strided_slice %4 {offsets = [0, 256], sizes = [16, 128], strides = [1, 1]} : vector<16x384xf32> to vector<16x128xf32>
    %cst_12 = arith.constant dense<0.000000e+00> : vector<16x128xf32>
    %14 = tpu.matmul %12, %13, %cst_12 {dimension_numbers = #tpu.dot_dimension_numbers<[1], [0], [0], [1], [0, 0, 1, 1], [], []>} : vector<16x16xf32>, vector<16x128xf32>, vector<16x128xf32> -> vector<16x128xf32>
    %15 = arith.addf %10, %14 : vector<16x128xf32>
    %16 = vector.broadcast %3 : vector<1x128xf32> to vector<16x128xf32>
    %17 = arith.addf %15, %16 : vector<16x128xf32>
    %cst_13 = arith.constant 0.000000e+00 : f32
    %18 = vector.broadcast %cst_13 : f32 to vector<16x128xf32>
    %19 = arith.cmpf oge, %17, %18 : vector<16x128xf32>
    %cst_14 = arith.constant 2.000000e-01 : f32
    %20 = vector.broadcast %cst_14 : f32 to vector<16x128xf32>
    %21 = arith.mulf %20, %17 : vector<16x128xf32>
    %22 = arith.select %19, %17, %21 : vector<16x128xi1>, vector<16x128xf32>
    %c0_15 = arith.constant 0 : index
    %c0_16 = arith.constant 0 : index
    %23 = vector.load %arg5[%c0_15, %c0_16] : memref<128x384xf32, #tpu.memory_space<vmem>>, vector<128x384xf32>
    %c0_17 = arith.constant 0 : index
    %c0_18 = arith.constant 0 : index
    %24 = vector.load %arg6[%c0_17, %c0_18] : memref<1x128xf32, #tpu.memory_space<vmem>>, vector<1x128xf32>
    %cst_19 = arith.constant dense<0.000000e+00> : vector<16x384xf32>
    %25 = tpu.matmul %22, %23, %cst_19 {dimension_numbers = #tpu.dot_dimension_numbers<[1], [0], [0], [1], [0, 0, 1, 1], [], []>} : vector<16x128xf32>, vector<128x384xf32>, vector<16x384xf32> -> vector<16x384xf32>
    %c0_20 = arith.constant 0 : index
    %c0_21 = arith.constant 0 : index
    %c0_22 = arith.constant 0 : index
    %26 = vector.load %arg3[%c0_20, %c0_21, %c0_22] : memref<3x16x16xf32, #tpu.memory_space<vmem>>, vector<1x16x16xf32>
    %27 = vector.shape_cast %26 : vector<1x16x16xf32> to vector<16x16xf32>
    %28 = vector.extract_strided_slice %25 {offsets = [0, 0], sizes = [16, 128], strides = [1, 1]} : vector<16x384xf32> to vector<16x128xf32>
    %cst_23 = arith.constant dense<0.000000e+00> : vector<16x128xf32>
    %29 = tpu.matmul %27, %28, %cst_23 {dimension_numbers = #tpu.dot_dimension_numbers<[1], [0], [0], [1], [0, 0, 1, 1], [], []>} : vector<16x16xf32>, vector<16x128xf32>, vector<16x128xf32> -> vector<16x128xf32>
    %30 = vector.extract_strided_slice %25 {offsets = [0, 128], sizes = [16, 128], strides = [1, 1]} : vector<16x384xf32> to vector<16x128xf32>
    %31 = arith.addf %29, %30 : vector<16x128xf32>
    %c2_24 = arith.constant 2 : index
    %c0_25 = arith.constant 0 : index
    %c0_26 = arith.constant 0 : index
    %32 = vector.load %arg3[%c2_24, %c0_25, %c0_26] : memref<3x16x16xf32, #tpu.memory_space<vmem>>, vector<1x16x16xf32>
    %33 = vector.shape_cast %32 : vector<1x16x16xf32> to vector<16x16xf32>
    %34 = vector.extract_strided_slice %25 {offsets = [0, 256], sizes = [16, 128], strides = [1, 1]} : vector<16x384xf32> to vector<16x128xf32>
    %cst_27 = arith.constant dense<0.000000e+00> : vector<16x128xf32>
    %35 = tpu.matmul %33, %34, %cst_27 {dimension_numbers = #tpu.dot_dimension_numbers<[1], [0], [0], [1], [0, 0, 1, 1], [], []>} : vector<16x16xf32>, vector<16x128xf32>, vector<16x128xf32> -> vector<16x128xf32>
    %36 = arith.addf %31, %35 : vector<16x128xf32>
    %37 = vector.broadcast %24 : vector<1x128xf32> to vector<16x128xf32>
    %38 = arith.addf %36, %37 : vector<16x128xf32>
    %cst_28 = arith.constant 0.000000e+00 : f32
    %39 = vector.broadcast %cst_28 : f32 to vector<16x128xf32>
    %40 = arith.cmpf oge, %38, %39 : vector<16x128xf32>
    %cst_29 = arith.constant 2.000000e-01 : f32
    %41 = vector.broadcast %cst_29 : f32 to vector<16x128xf32>
    %42 = arith.mulf %41, %38 : vector<16x128xf32>
    %43 = arith.select %40, %38, %42 : vector<16x128xi1>, vector<16x128xf32>
    %c0_30 = arith.constant 0 : index
    %c0_31 = arith.constant 0 : index
    %c0_32 = arith.constant 0 : index
    %44 = vector.load %arg7[%c0_30, %c0_31, %c0_32] : memref<1x16x128xf32, #tpu.memory_space<vmem>>, vector<1x16x128xf32>
    %45 = vector.shape_cast %44 : vector<1x16x128xf32> to vector<16x128xf32>
    %46 = vector.shape_cast %43 : vector<16x128xf32> to vector<1x16x128xf32>
    tpu.vector_store %arg7[%c0_30, %c0_31, %c0_32], %46 {strides = array<i32>} : memref<1x16x128xf32, #tpu.memory_space<vmem>>, vector<1x16x128xf32>,
    return
  }
  func.func @transform_0(%arg0: i32) -> (i32, i32, i32) {
    %c0_i32 = arith.constant 0 : i32
    %c0_i32_0 = arith.constant 0 : i32
    %c0_i32_1 = arith.constant 0 : i32
    return %arg0, %c0_i32, %c0_i32_0 : i32, i32, i32
  }
  func.func @transform_1(%arg0: i32) -> (i32, i32) {
    %c0_i32 = arith.constant 0 : i32
    %c0_i32_0 = arith.constant 0 : i32
    %c0_i32_1 = arith.constant 0 : i32
    return %c0_i32, %c0_i32_0 : i32, i32
  }
  func.func @transform_2(%arg0: i32) -> (i32, i32, i32) {
    %c0_i32 = arith.constant 0 : i32
    %c0_i32_0 = arith.constant 0 : i32
    %c0_i32_1 = arith.constant 0 : i32
    %c0_i32_2 = arith.constant 0 : i32
    return %c0_i32, %c0_i32_0, %c0_i32_1 : i32, i32, i32
  }
  func.func @transform_3(%arg0: i32) -> (i32, i32) {
    %c0_i32 = arith.constant 0 : i32
    %c0_i32_0 = arith.constant 0 : i32
    %c0_i32_1 = arith.constant 0 : i32
    return %c0_i32, %c0_i32_0 : i32, i32
  }
  func.func @transform_4(%arg0: i32) -> (i32, i32) {
    %c0_i32 = arith.constant 0 : i32
    %c0_i32_0 = arith.constant 0 : i32
    %c0_i32_1 = arith.constant 0 : i32
    return %c0_i32, %c0_i32_0 : i32, i32
  }
  func.func @transform_5(%arg0: i32) -> (i32, i32) {
    %c0_i32 = arith.constant 0 : i32
    %c0_i32_0 = arith.constant 0 : i32
    %c0_i32_1 = arith.constant 0 : i32
    return %c0_i32, %c0_i32_0 : i32, i32
  }
  func.func @transform_6(%arg0: i32) -> (i32, i32, i32) {
    %c0_i32 = arith.constant 0 : i32
    %c0_i32_0 = arith.constant 0 : i32
    %c0_i32_1 = arith.constant 0 : i32
    return %arg0, %c0_i32, %c0_i32_0 : i32, i32, i32
  }
}

</mosaic_0001>

<llo_original>
// kernel: tpu_custom_call.1
$region0: #{tpu_custom_call.1}
  #allocation0 [shape = 'u32[]', space=smem, size = 0x4, offset = 0x4, fixed_abs, tag = 'smem constant byte address 0x4 - core index']
  #allocation1 [shape = 'u32[144,128]{1,0:T(1,128)}', space=vmem, size = 0x12000, scoped, tag = 'internal scratch']
  %s0 = inlined_call_operand.hbm [shape: f32[2,16,64], index: 0, kind: input, shape index: {}]
  %s1 = inlined_call_operand.hbm [shape: f32[64,384], index: 1, kind: input, shape index: {}]
  %s2 = inlined_call_operand.hbm [shape: f32[3,16,16], index: 2, kind: input, shape index: {}]
  %s3 = inlined_call_operand.vmem [shape: f32[1,128], index: 3, kind: input, shape index: {}]
  %s4 = inlined_call_operand.hbm [shape: f32[128,384], index: 4, kind: input, shape index: {}]
  %s5 = inlined_call_operand.vmem [shape: f32[1,128], index: 5, kind: input, shape index: {}]
  %s6 = inlined_call_operand.hbm [shape: f32[2,16,128], index: 6, kind: output, shape index: {}]
  %s7 = sld [smem:[#allocation0]]
  $region73: #{tpu_custom_call.1} parent=0
    _
  %s9 = ssub.s32 1, %s7
  %s10 = scalar_select 0, %s9, %s7
  $region1: #{tpu_custom_call.1} parent=0
    #allocation2 [shape = 'u8[16384]{0}', space=vmem, size = 0x4000, scoped, tag = 'input window, operand 0']
    #allocation3 [shape = 's32[2]{0}', space=sflag, size = 0x8, scoped, tag = 'scoped memory for tpu_custom_call.1']
    #allocation4 [shape = 's32[2]{0}', space=sflag, size = 0x8, scoped, tag = 'scoped memory for tpu_custom_call.1']
    #allocation5 [shape = 'u8[98304]{0}', space=vmem, size = 0x18000, scoped, tag = 'input window, operand 1, single buffered']
    #allocation6 [shape = 's32[1]{0}', space=sflag, size = 0x4, scoped, tag = 'scoped memory for tpu_custom_call.1']
    #allocation7 [shape = 'u8[24576]{0}', space=vmem, size = 0x6000, scoped, tag = 'input window, operand 2, single buffered']
    #allocation8 [shape = 'u8[196608]{0}', space=vmem, size = 0x30000, scoped, tag = 'input window, operand 4, single buffered']
    #allocation9 [shape = 's32[1]{0}', space=sflag, size = 0x4, scoped, tag = 'scoped memory for tpu_custom_call.1']
    #allocation10 [shape = 'u8[16384]{0}', space=vmem, size = 0x4000, scoped, tag = 'output window, operand 0']
    %11 = vsyncpa [#allocation3], 0
    %s12 = scalar_lea.sflag [#allocation3], 1
    %13 = vsyncpa %s12, 0
    %14 = vsyncpa [#allocation6], 0
    %15 = vsyncpa [#allocation9], 0
    %16 = vsyncpa [#allocation4], 0
    %s17 = scalar_lea.sflag [#allocation4], 1
    %18 = vsyncpa %s17, 0
    loop: start=0, step=1, limit=4
    $region2: #{tpu_custom_call.1} parent=1 // loop_pre_header
      _
    $region3: #{tpu_custom_call.1} parent=1 // loop_header
      %s20 = sphi 0, %s24
      %p21 = scmp.ge.s32.totalorder %s20, 4
      %s30 = sphi 0, %s32
      %s33 = sphi 0, %s30
      %s34 = sphi 0, %s33
      %s50 = sphi 0, %s34
      %s54 = sphi 0, %s54
      %s56 = sphi 0, %s54
      %s57 = sphi 0, %s56
      %s71 = sphi 0, %s57
      %s75 = sphi 0, %s75
      %s77 = sphi 0, %s75
      %s78 = sphi 0, %s77
      %s92 = sphi 0, %s78
      %s96 = sphi 0, %s96
      %s98 = sphi 0, %s96
      %s99 = sphi 0, %s98
      %s113 = sphi 0, %s99
      %s117 = sphi 0, %s117
      %s119 = sphi 0, %s117
      %s120 = sphi 0, %s119
      %s134 = sphi 0, %s120
      %s138 = sphi 0, %s138
      %s140 = sphi 0, %s138
      %s141 = sphi 0, %s140
      %s155 = sphi 0, %s141
      %s161 = sphi 0, %s163
      %s164 = sphi 0, %s161
      %s165 = sphi 0, %s164
      %s181 = sphi 0, %s165
    $region4: #{tpu_custom_call.1} parent=1 // loop_header_branch
      %23 = sbr.rel (%p21) target = $region8
    $region5: #{tpu_custom_call.1} parent=1 // loop_body
      %s25 = ssub.s32 %s20, 1
      %s26 = ssub.s32 %s20, 2
      %s27 = sadd.s32 %s20, 1
      %s28 = ssub.s32 %s20, %s27
      %p29 = scmp.eq.s32.totalorder %s28, 0
      %s31 = sadd.s32 %s30, 1
      %s32 = scalar_select %p29, %s30, %s31
      %p35 = pneg %p29
      %p36 = scmp.eq.s32.totalorder %s20, 1
      %p37 = por %p35, %p36
      %p38 = scmp.ne.s32.totalorder %s30, %s33
      %p39 = scmp.eq.s32.totalorder %s20, 0
      %p40 = por %p38, %p39
      %p41 = scmp.ne.s32.totalorder %s30, %s33
      %p42 = scmp.eq.s32.totalorder %s25, 1
      %p43 = por %p41, %p42
      %p44 = scmp.ne.s32.totalorder %s33, %s34
      %p45 = scmp.eq.s32.totalorder %s25, 0
      %p46 = por %p44, %p45
      %p47 = scmp.ne.s32.totalorder %s33, %s34
      %p48 = scmp.eq.s32.totalorder %s26, 1
      %p49 = por %p47, %p48
      %p51 = scmp.ne.s32.totalorder %s34, %s50
      %p52 = scmp.eq.s32.totalorder %s26, 0
      %p53 = por %p51, %p52
      %s55 = sadd.s32 %s54, 1
      %p58 = scmp.eq.s32.totalorder %s20, 1
      %p59 = scmp.ne.s32.totalorder %s54, %s56
      %p60 = scmp.eq.s32.totalorder %s20, 0
      %p61 = por %p59, %p60
      %p62 = scmp.ne.s32.totalorder %s54, %s56
      %p63 = scmp.eq.s32.totalorder %s25, 1
      %p64 = por %p62, %p63
      %p65 = scmp.ne.s32.totalorder %s56, %s57
      %p66 = scmp.eq.s32.totalorder %s25, 0
      %p67 = por %p65, %p66
      %p68 = scmp.ne.s32.totalorder %s56, %s57
      %p69 = scmp.eq.s32.totalorder %s26, 1
      %p70 = por %p68, %p69
      %p72 = scmp.ne.s32.totalorder %s57, %s71
      %p73 = scmp.eq.s32.totalorder %s26, 0
      %p74 = por %p72, %p73
      %s76 = sadd.s32 %s75, 1
      %p79 = scmp.eq.s32.totalorder %s20, 1
      %p80 = scmp.ne.s32.totalorder %s75, %s77
      %p81 = scmp.eq.s32.totalorder %s20, 0
      %p82 = por %p80, %p81
      %p83 = scmp.ne.s32.totalorder %s75, %s77
      %p84 = scmp.eq.s32.totalorder %s25, 1
      %p85 = por %p83, %p84
      %p86 = scmp.ne.s32.totalorder %s77, %s78
      %p87 = scmp.eq.s32.totalorder %s25, 0
      %p88 = por %p86, %p87
      %p89 = scmp.ne.s32.totalorder %s77, %s78
      %p90 = scmp.eq.s32.totalorder %s26, 1
      %p91 = por %p89, %p90
      %p93 = scmp.ne.s32.totalorder %s78, %s92
      %p94 = scmp.eq.s32.totalorder %s26, 0
      %p95 = por %p93, %p94
      %s97 = sadd.s32 %s96, 1
      %p100 = scmp.eq.s32.totalorder %s20, 1
      %p101 = scmp.ne.s32.totalorder %s96, %s98
      %p102 = scmp.eq.s32.totalorder %s20, 0
      %p103 = por %p101, %p102
      %p104 = scmp.ne.s32.totalorder %s96, %s98
      %p105 = scmp.eq.s32.totalorder %s25, 1
      %p106 = por %p104, %p105
      %p107 = scmp.ne.s32.totalorder %s98, %s99
      %p108 = scmp.eq.s32.totalorder %s25, 0
      %p109 = por %p107, %p108
      %p110 = scmp.ne.s32.totalorder %s98, %s99
      %p111 = scmp.eq.s32.totalorder %s26, 1
      %p112 = por %p110, %p111
      %p114 = scmp.ne.s32.totalorder %s99, %s113
      %p115 = scmp.eq.s32.totalorder %s26, 0
      %p116 = por %p114, %p115
      %s118 = sadd.s32 %s117, 1
      %p121 = scmp.eq.s32.totalorder %s20, 1
      %p122 = scmp.ne.s32.totalorder %s117, %s119
      %p123 = scmp.eq.s32.totalorder %s20, 0
      %p124 = por %p122, %p123
      %p125 = scmp.ne.s32.totalorder %s117, %s119
      %p126 = scmp.eq.s32.totalorder %s25, 1
      %p127 = por %p125, %p126
      %p128 = scmp.ne.s32.totalorder %s119, %s120
      %p129 = scmp.eq.s32.totalorder %s25, 0
      %p130 = por %p128, %p129
      %p131 = scmp.ne.s32.totalorder %s119, %s120
      %p132 = scmp.eq.s32.totalorder %s26, 1
      %p133 = por %p131, %p132
      %p135 = scmp.ne.s32.totalorder %s120, %s134
      %p136 = scmp.eq.s32.totalorder %s26, 0
      %p137 = por %p135, %p136
      %s139 = sadd.s32 %s138, 1
      %p142 = scmp.eq.s32.totalorder %s20, 1
      %p143 = scmp.ne.s32.totalorder %s138, %s140
      %p144 = scmp.eq.s32.totalorder %s20, 0
      %p145 = por %p143, %p144
      %p146 = scmp.ne.s32.totalorder %s138, %s140
      %p147 = scmp.eq.s32.totalorder %s25, 1
      %p148 = por %p146, %p147
      %p149 = scmp.ne.s32.totalorder %s140, %s141
      %p150 = scmp.eq.s32.totalorder %s25, 0
      %p151 = por %p149, %p150
      %p152 = scmp.ne.s32.totalorder %s140, %s141
      %p153 = scmp.eq.s32.totalorder %s26, 1
      %p154 = por %p152, %p153
      %p156 = scmp.ne.s32.totalorder %s141, %s155
      %p157 = scmp.eq.s32.totalorder %s26, 0
      %p158 = por %p156, %p157
      %s159 = ssub.s32 %s20, %s27
      %p160 = scmp.eq.s32.totalorder %s159, 0
      %s162 = sadd.s32 %s161, 1
      %s163 = scalar_select %p160, %s161, %s162
      %p166 = pneg %p160
      %p167 = scmp.eq.s32.totalorder %s20, 1
      %p168 = por %p166, %p167
      %p169 = scmp.ne.s32.totalorder %s161, %s164
      %p170 = scmp.eq.s32.totalorder %s20, 0
      %p171 = por %p169, %p170
      %p172 = scmp.ne.s32.totalorder %s161, %s164
      %p173 = scmp.eq.s32.totalorder %s25, 1
      %p174 = por %p172, %p173
      %p175 = scmp.ne.s32.totalorder %s164, %s165
      %p176 = scmp.eq.s32.totalorder %s25, 0
      %p177 = por %p175, %p176
      %p178 = scmp.ne.s32.totalorder %s164, %s165
      %p179 = scmp.eq.s32.totalorder %s26, 1
      %p180 = por %p178, %p179
      %p182 = scmp.ne.s32.totalorder %s165, %s181
      %p183 = scmp.eq.s32.totalorder %s26, 0
      %p184 = por %p182, %p183
      %p185 = scmp.le.s32.totalorder 1, %s20
      %p186 = scmp.lt.s32.totalorder %s20, 3
      %p187 = pnand %p185, %p186
      %p188 = pneg %p187
      // Predicated region
      $region9: #{tpu_custom_call.1} parent=5 // pred_check
        _
      $region10: #{tpu_custom_call.1} parent=5 // pred_check_branch
        %190 = sbr.rel (%p187) target = $region12
      $region11: #{tpu_custom_call.1} parent=5 // pred_region
        %s191 = ssub.s32 %s20, 1
        // Predicated region
        $region13: #{tpu_custom_call.1} parent=11 // pred_check
          %p192 = pneg %p67
        $region14: #{tpu_custom_call.1} parent=11 // pred_check_branch
          %194 = sbr.rel (%p192) target = $region16
        $region15: #{tpu_custom_call.1} parent=11 // pred_region
          %s196 = ssub.s32 3072, 3072
          %197 = vsyncadd [#allocation6], %s196
          %s198 = sshll.u32 [#allocation5], 4
          %s199 = int_to_ptr.vmem [resolvable:$true] %s198
          %204 = dma.hbm_to_vmem [thread:$0]  %s1, 3072, %s199, [#allocation6], 384, 384, 24
        $region16: #{tpu_custom_call.1} parent=11 // pred_fallthru
          _
        // Predicated region
        $region17: #{tpu_custom_call.1} parent=11 // pred_check
          %p205 = pneg %p88
        $region18: #{tpu_custom_call.1} parent=11 // pred_check_branch
          %207 = sbr.rel (%p205) target = $region20
        $region19: #{tpu_custom_call.1} parent=11 // pred_region
          %s209 = ssub.s32 768, 768
          %210 = vsyncadd [#allocation6], %s209
          %s211 = sshll.u32 [#allocation7], 4
          %s212 = int_to_ptr.vmem [resolvable:$true] %s211
          %217 = dma.hbm_to_vmem [thread:$0]  %s2, 768, %s212, [#allocation6], 128, 128, 8
        $region20: #{tpu_custom_call.1} parent=11 // pred_fallthru
          _
        // Predicated region
        $region21: #{tpu_custom_call.1} parent=11 // pred_check
          %p218 = pneg %p109
        $region22: #{tpu_custom_call.1} parent=11 // pred_check_branch
          %220 = sbr.rel (%p218) target = $region24
        $region23: #{tpu_custom_call.1} parent=11 // pred_region
          _
        $region24: #{tpu_custom_call.1} parent=11 // pred_fallthru
          _
        // Predicated region
        $region25: #{tpu_custom_call.1} parent=11 // pred_check
          %p221 = pneg %p130
        $region26: #{tpu_custom_call.1} parent=11 // pred_check_branch
          %223 = sbr.rel (%p221) target = $region28
        $region27: #{tpu_custom_call.1} parent=11 // pred_region
          %s225 = ssub.s32 6144, 6144
          %226 = vsyncadd [#allocation9], %s225
          %s227 = sshll.u32 [#allocation8], 4
          %s228 = int_to_ptr.vmem [resolvable:$true] %s227
          %233 = dma.hbm_to_vmem [thread:$0]  %s4, 6144, %s228, [#allocation9], 384, 384, 24
        $region28: #{tpu_custom_call.1} parent=11 // pred_fallthru
          _
        // Predicated region
        $region29: #{tpu_custom_call.1} parent=11 // pred_check
          %p234 = pneg %p151
        $region30: #{tpu_custom_call.1} parent=11 // pred_check_branch
          %236 = sbr.rel (%p234) target = $region32
        $region31: #{tpu_custom_call.1} parent=11 // pred_region
          _
        $region32: #{tpu_custom_call.1} parent=11 // pred_fallthru
          _
      $region12: #{tpu_custom_call.1} parent=5 // pred_fallthru
        _
      %p237 = scmp.lt.s32.totalorder %s20, 2
      // Predicated region
      $region33: #{tpu_custom_call.1} parent=5 // pred_check
        %p238 = pneg %p237
      $region34: #{tpu_custom_call.1} parent=5 // pred_check_branch
        %240 = sbr.rel (%p238) target = $region36
      $region35: #{tpu_custom_call.1} parent=5 // pred_region
        // Predicated region
        $region37: #{tpu_custom_call.1} parent=35 // pred_check
          %p241 = pneg %p40
        $region38: #{tpu_custom_call.1} parent=35 // pred_check_branch
          %243 = sbr.rel (%p241) target = $region40
        $region39: #{tpu_custom_call.1} parent=35 // pred_region
          %s244 = sand.u32 %s30, 1
          %s245 = scalar_lea.sflag [#allocation3], %s244
          %s246 = sand.u32 %s30, 1
          %s247 = smul.addr %s246, 16
          %s248 = scalar_lea.vmem [#allocation2], %s247
          %s250 = ssub.s32 256, 256
          %251 = vsyncadd %s245, %s250
          %s252 = smul.addr %s20, 2
          %s253 = smul.addr %s252, 128
          %s254 = scalar_lea.hbm %s0, %s253
          %s255 = sshll.u32 %s248, 4
          %s256 = int_to_ptr.vmem [resolvable:$true] %s255
          %261 = dma.hbm_to_vmem [thread:$0]  %s254, 256, %s256, %s245, 128, 128, 8
        $region40: #{tpu_custom_call.1} parent=35 // pred_fallthru
          _
      $region36: #{tpu_custom_call.1} parent=5 // pred_fallthru
        _
      %p262 = scmp.le.s32.totalorder 1, %s20
      %p263 = scmp.lt.s32.totalorder %s20, 3
      %p264 = pnand %p262, %p263
      %p265 = pneg %p264
      // Predicated region
      $region41: #{tpu_custom_call.1} parent=5 // pred_check
        _
      $region42: #{tpu_custom_call.1} parent=5 // pred_check_branch
        %267 = sbr.rel (%p264) target = $region44
      $region43: #{tpu_custom_call.1} parent=5 // pred_region
        %s268 = ssub.s32 %s20, 1
        %s269 = sand.u32 %s33, 1
        %s270 = scalar_lea.sflag [#allocation3], %s269
        %s271 = sand.u32 %s33, 1
        %s272 = smul.addr %s271, 16
        %s273 = scalar_lea.vmem [#allocation2], %s272
        // Predicated region
        $region45: #{tpu_custom_call.1} parent=43 // pred_check
          %p274 = pneg %p46
        $region46: #{tpu_custom_call.1} parent=43 // pred_check_branch
          %276 = sbr.rel (%p274) target = $region48
        $region47: #{tpu_custom_call.1} parent=43 // pred_region
          %277 = dma.done %s270, 256
        $region48: #{tpu_custom_call.1} parent=43 // pred_fallthru
          _
        // Predicated region
        $region49: #{tpu_custom_call.1} parent=43 // pred_check
          %p278 = pneg %p67
        $region50: #{tpu_custom_call.1} parent=43 // pred_check_branch
          %280 = sbr.rel (%p278) target = $region52
        $region51: #{tpu_custom_call.1} parent=43 // pred_region
          %281 = dma.done [#allocation6], 3072
        $region52: #{tpu_custom_call.1} parent=43 // pred_fallthru
          _
        // Predicated region
        $region53: #{tpu_custom_call.1} parent=43 // pred_check
          %p282 = pneg %p88
        $region54: #{tpu_custom_call.1} parent=43 // pred_check_branch
          %284 = sbr.rel (%p282) target = $region56
        $region55: #{tpu_custom_call.1} parent=43 // pred_region
          %285 = dma.done [#allocation6], 768
        $region56: #{tpu_custom_call.1} parent=43 // pred_fallthru
          _
        // Predicated region
        $region57: #{tpu_custom_call.1} parent=43 // pred_check
          %p286 = pneg %p130
        $region58: #{tpu_custom_call.1} parent=43 // pred_check_branch
          %288 = sbr.rel (%p286) target = $region60
        $region59: #{tpu_custom_call.1} parent=43 // pred_region
          %289 = dma.done [#allocation9], 6144
        $region60: #{tpu_custom_call.1} parent=43 // pred_fallthru
          _
        %s290 = sand.u32 %s33, 1
        %s291 = scalar_lea.sflag [#allocation3], %s290
        %s292 = sand.u32 %s33, 1
        %s293 = smul.addr %s292, 16
        %s294 = scalar_lea.vmem [#allocation2], %s293
        %p295 = pneg %p46
        %p296 = pneg %p43
        %p297 = pneg %p67
        %p298 = pneg %p64
        %p299 = pneg %p88
        %p300 = pneg %p85
        %p301 = pneg %p109
        %p302 = pneg %p106
        %p303 = pneg %p130
        %p304 = pneg %p127
        %p305 = pneg %p151
        %p306 = pneg %p148
        %p307 = pneg %p177
        %p308 = pneg %p174
        %s309 = sand.u32 %s164, 1
        %s310 = scalar_lea.sflag [#allocation4], %s309
        %s311 = sand.u32 %s164, 1
        %s312 = smul.addr %s311, 16
        %s313 = scalar_lea.vmem [#allocation10], %s312
        %v314 = vld [vmem:[%s273] sm:$0xff]
        %v315 = vld [vmem:[%s273 + $0x8] sm:$0xff]
        %v316 = vld [vmem:[#allocation5] sm:$0xff]
        %v317 = vld [vmem:[#allocation5 + $0x8] sm:$0xff]
        %v318 = vld [vmem:[#allocation5 + $0x10] sm:$0xff]
        %v319 = vld [vmem:[#allocation5 + $0x18] sm:$0xff]
        %v320 = vld [vmem:[#allocation5 + $0x20] sm:$0xff]
        %v321 = vld [vmem:[#allocation5 + $0x28] sm:$0xff]
        %v322 = vld [vmem:[#allocation5 + $0x30] sm:$0xff]
        %v323 = vld [vmem:[#allocation5 + $0x38] sm:$0xff]
        %v324 = vld [vmem:[#allocation5 + $0x40] sm:$0xff]
        %v325 = vld [vmem:[#allocation5 + $0x48] sm:$0xff]
        %v326 = vld [vmem:[#allocation5 + $0x50] sm:$0xff]
        %v327 = vld [vmem:[#allocation5 + $0x58] sm:$0xff]
        %v328 = vld [vmem:[#allocation5 + $0x60] sm:$0xff]
        %v329 = vld [vmem:[#allocation5 + $0x68] sm:$0xff]
        %v330 = vld [vmem:[#allocation5 + $0x70] sm:$0xff]
        %v331 = vld [vmem:[#allocation5 + $0x78] sm:$0xff]
        %v332 = vld [vmem:[#allocation5 + $0x80] sm:$0xff]
        %v333 = vld [vmem:[#allocation5 + $0x88] sm:$0xff]
        %v334 = vld [vmem:[#allocation5 + $0x90] sm:$0xff]
        %v335 = vld [vmem:[#allocation5 + $0x98] sm:$0xff]
        %v336 = vld [vmem:[#allocation5 + $0xa0] sm:$0xff]
        %v337 = vld [vmem:[#allocation5 + $0xa8] sm:$0xff]
        %v338 = vld [vmem:[#allocation5 + $0xb0] sm:$0xff]
        %v339 = vld [vmem:[#allocation5 + $0xb8] sm:$0xff]
        %v340 = vld [vmem:[%s3] sm:$0x1]
        %vm341 = vcmask 523264
        %v343 = vsel %vm341, %v314, 0
        %v346 = vsel %vm341, %v315, 0
        %348 = vmatprep.subr.mxu0 0.0
        %349 = vmatpush1.msra.mxu0 0.0
        %350 = vmatprep.subr.mxu0 0.0
        %351 = vmatpush1.msra.mxu0 0.0
        %352 = vmatprep.subr.mxu0 0.0
        %353 = vmatpush1.msra.mxu0 0.0
        %354 = vmatprep.subr.mxu0 0.0
        %355 = vmatpush1.msra.mxu0 0.0
        %356 = vmatprep.subr.mxu0 0.0
        %357 = vmatpush1.msra.mxu0 0.0
        %358 = vmatprep.subr.mxu0 0.0
        %359 = vmatpush1.msra.mxu0 0.0
        %360 = vmatprep.subr.mxu0 0.0
        %361 = vmatpush1.msra.mxu0 0.0
        %362 = vmatprep.subr.mxu0 0.0
        %363 = vmatpush1.msra.mxu0 0.0
        %364 = vmatprep.subr.mxu0 %v338
        %365 = vmatpush1.msra.mxu0 %v337
        %366 = vmatprep.subr.mxu0 %v335
        %367 = vmatpush1.msra.mxu0 %v334
        %368 = vmatprep.subr.mxu0 %v332
        %369 = vmatpush1.msra.mxu0 %v331
        %370 = vmatprep.subr.mxu0 %v329
        %371 = vmatpush1.msra.mxu0 %v328
        %372 = vmatprep.subr.mxu0 %v326
        %373 = vmatpush1.msra.mxu0 %v325
        %374 = vmatprep.subr.mxu0 %v323
        %375 = vmatpush1.msra.mxu0 %v322
        %376 = vmatprep.subr.mxu0 %v320
        %377 = vmatpush1.msra.mxu0 %v319
        %378 = vmatprep.subr.mxu0 %v317
        %379 = vmatpush1.msra.mxu0 %v316
        %380 = vmatprep.subr.mxu0 0.0
        %381 = vmatpush2.msra.mxu0 0.0
        %382 = vmatprep.subr.mxu0 0.0
        %383 = vmatpush2.msra.mxu0 0.0
        %384 = vmatprep.subr.mxu0 0.0
        %385 = vmatpush2.msra.mxu0 0.0
        %386 = vmatprep.subr.mxu0 0.0
        %387 = vmatpush2.msra.mxu0 0.0
        %388 = vmatprep.subr.mxu0 0.0
        %389 = vmatpush2.msra.mxu0 0.0
        %390 = vmatprep.subr.mxu0 0.0
        %391 = vmatpush2.msra.mxu0 0.0
        %392 = vmatprep.subr.mxu0 0.0
        %393 = vmatpush2.msra.mxu0 0.0
        %394 = vmatprep.subr.mxu0 0.0
        %395 = vmatpush2.msra.mxu0 0.0
        %396 = vmatprep.subr.mxu0 0.0
        %397 = vmatpush2.msra.mxu0 0.0
        %398 = vmatprep.subr.mxu0 0.0
        %399 = vmatpush2.msra.mxu0 0.0
        %400 = vmatprep.subr.mxu0 0.0
        %401 = vmatpush2.msra.mxu0 0.0
        %402 = vmatprep.subr.mxu0 0.0
        %403 = vmatpush2.msra.mxu0 0.0
        %404 = vmatprep.subr.mxu0 0.0
        %405 = vmatpush2.msra.mxu0 0.0
        %406 = vmatprep.subr.mxu0 0.0
        %407 = vmatpush2.msra.mxu0 0.0
        %408 = vmatprep.subr.mxu0 0.0
        %409 = vmatpush2.msra.mxu0 0.0
        %410 = vmatprep.subr.mxu0 0.0
        %411 = vmatpush2.msra.mxu0 0.0
        %412 = vmatprep.mubr.f32.mxu0 0.0
        %413 = vmatmul.mubr.f32.gmra.mxu0 %v343
        %v414 = vpop.f32.mrf.mxu0
        %v415 = vadd.f32 0.0, %v414
        %v416 = vpop.f32.mrf.mxu0
        %v417 = vadd.f32 0.0, %v416
        %418 = vmatprep.mubr.f32.mxu0 0.0
        %419 = vmatmul.mubr.f32.gmra.mxu0 %v346
        %v420 = vpop.f32.mrf.mxu0
        %v421 = vadd.f32 0.0, %v420
        %v422 = vpop.f32.mrf.mxu0
        %v423 = vadd.f32 0.0, %v422
        %424 = vdwg.mxu0
        %425 = vmatprep.subr.mxu0 0.0
        %426 = vmatpush1.msra.mxu0 0.0
        %427 = vmatprep.subr.mxu0 0.0
        %428 = vmatpush1.msra.mxu0 0.0
        %429 = vmatprep.subr.mxu0 0.0
        %430 = vmatpush1.msra.mxu0 0.0
        %431 = vmatprep.subr.mxu0 0.0
        %432 = vmatpush1.msra.mxu0 0.0
        %433 = vmatprep.subr.mxu0 0.0
        %434 = vmatpush1.msra.mxu0 0.0
        %435 = vmatprep.subr.mxu0 0.0
        %436 = vmatpush1.msra.mxu0 0.0
        %437 = vmatprep.subr.mxu0 0.0
        %438 = vmatpush1.msra.mxu0 0.0
        %439 = vmatprep.subr.mxu0 0.0
        %440 = vmatpush1.msra.mxu0 0.0
        %441 = vmatprep.subr.mxu0 0.0
        %442 = vmatpush1.msra.mxu0 %v339
        %443 = vmatprep.subr.mxu0 0.0
        %444 = vmatpush1.msra.mxu0 %v336
        %445 = vmatprep.subr.mxu0 0.0
        %446 = vmatpush1.msra.mxu0 %v333
        %447 = vmatprep.subr.mxu0 0.0
        %448 = vmatpush1.msra.mxu0 %v330
        %449 = vmatprep.subr.mxu0 0.0
        %450 = vmatpush1.msra.mxu0 %v327
        %451 = vmatprep.subr.mxu0 0.0
        %452 = vmatpush1.msra.mxu0 %v324
        %453 = vmatprep.subr.mxu0 0.0
        %454 = vmatpush1.msra.mxu0 %v321
        %455 = vmatprep.subr.mxu0 0.0
        %456 = vmatpush1.msra.mxu0 %v318
        %457 = vmatprep.subr.mxu0 0.0
        %458 = vmatpush2.msra.mxu0 0.0
        %459 = vmatprep.subr.mxu0 0.0
        %460 = vmatpush2.msra.mxu0 0.0
        %461 = vmatprep.subr.mxu0 0.0
        %462 = vmatpush2.msra.mxu0 0.0
        %463 = vmatprep.subr.mxu0 0.0
        %464 = vmatpush2.msra.mxu0 0.0
        %465 = vmatprep.subr.mxu0 0.0
        %466 = vmatpush2.msra.mxu0 0.0
        %467 = vmatprep.subr.mxu0 0.0
        %468 = vmatpush2.msra.mxu0 0.0
        %469 = vmatprep.subr.mxu0 0.0
        %470 = vmatpush2.msra.mxu0 0.0
        %471 = vmatprep.subr.mxu0 0.0
        %472 = vmatpush2.msra.mxu0 0.0
        %473 = vmatprep.subr.mxu0 0.0
        %474 = vmatpush2.msra.mxu0 0.0
        %475 = vmatprep.subr.mxu0 0.0
        %476 = vmatpush2.msra.mxu0 0.0
        %477 = vmatprep.subr.mxu0 0.0
        %478 = vmatpush2.msra.mxu0 0.0
        %479 = vmatprep.subr.mxu0 0.0
        %480 = vmatpush2.msra.mxu0 0.0
        %481 = vmatprep.subr.mxu0 0.0
        %482 = vmatpush2.msra.mxu0 0.0
        %483 = vmatprep.subr.mxu0 0.0
        %484 = vmatpush2.msra.mxu0 0.0
        %485 = vmatprep.subr.mxu0 0.0
        %486 = vmatpush2.msra.mxu0 0.0
        %487 = vmatprep.subr.mxu0 0.0
        %488 = vmatpush2.msra.mxu0 0.0
        %489 = vmatprep.mubr.f32.mxu0 0.0
        %490 = vmatmul.mubr.f32.gmra.mxu0 %v343
        %v491 = vpop.f32.mrf.mxu0
        %v492 = vadd.f32 0.0, %v491
        %v493 = vpop.f32.mrf.mxu0
        %494 = vmatprep.mubr.f32.mxu0 0.0
        %495 = vmatmul.mubr.f32.gmra.mxu0 %v346
        %v496 = vpop.f32.mrf.mxu0
        %v497 = vadd.f32 0.0, %v496
        %v498 = vpop.f32.mrf.mxu0
        %499 = vdwg.mxu0
        %v500 = vld [vmem:[#allocation7] sm:$0xff]
        %v501 = vld [vmem:[#allocation7 + $0x8] sm:$0xff]
        %vm502 = vcmask 130048
        %v504 = vsel %vm502, %v500, 0
        %v507 = vsel %vm502, %v501, 0
        %509 = vmatprep.subr.mxu0 0.0
        %510 = vmatpush1.msra.mxu0 0.0
        %511 = vmatprep.subr.mxu0 0.0
        %512 = vmatpush1.msra.mxu0 0.0
        %513 = vmatprep.subr.mxu0 0.0
        %514 = vmatpush1.msra.mxu0 0.0
        %515 = vmatprep.subr.mxu0 0.0
        %516 = vmatpush1.msra.mxu0 0.0
        %517 = vmatprep.subr.mxu0 0.0
        %518 = vmatpush1.msra.mxu0 0.0
        %519 = vmatprep.subr.mxu0 0.0
        %520 = vmatpush1.msra.mxu0 0.0
        %521 = vmatprep.subr.mxu0 0.0
        %522 = vmatpush1.msra.mxu0 0.0
        %523 = vmatprep.subr.mxu0 0.0
        %524 = vmatpush1.msra.mxu0 0.0
        %525 = vmatprep.subr.mxu0 0.0
        %526 = vmatpush1.msra.mxu0 0.0
        %527 = vmatprep.subr.mxu0 0.0
        %528 = vmatpush1.msra.mxu0 0.0
        %529 = vmatprep.subr.mxu0 0.0
        %530 = vmatpush1.msra.mxu0 0.0
        %531 = vmatprep.subr.mxu0 0.0
        %532 = vmatpush1.msra.mxu0 0.0
        %533 = vmatprep.subr.mxu0 0.0
        %534 = vmatpush1.msra.mxu0 0.0
        %535 = vmatprep.subr.mxu0 0.0
        %536 = vmatpush1.msra.mxu0 0.0
        %537 = vmatprep.subr.mxu0 0.0
        %538 = vmatpush1.msra.mxu0 %v421
        %539 = vmatprep.subr.mxu0 0.0
        %540 = vmatpush1.msra.mxu0 %v415
        %541 = vmatprep.subr.mxu0 0.0
        %542 = vmatpush2.msra.mxu0 0.0
        %543 = vmatprep.subr.mxu0 0.0
        %544 = vmatpush2.msra.mxu0 0.0
        %545 = vmatprep.subr.mxu0 0.0
        %546 = vmatpush2.msra.mxu0 0.0
        %547 = vmatprep.subr.mxu0 0.0
        %548 = vmatpush2.msra.mxu0 0.0
        %549 = vmatprep.subr.mxu0 0.0
        %550 = vmatpush2.msra.mxu0 0.0
        %551 = vmatprep.subr.mxu0 0.0
        %552 = vmatpush2.msra.mxu0 0.0
        %553 = vmatprep.subr.mxu0 0.0
        %554 = vmatpush2.msra.mxu0 0.0
        %555 = vmatprep.subr.mxu0 0.0
        %556 = vmatpush2.msra.mxu0 0.0
        %557 = vmatprep.subr.mxu0 0.0
        %558 = vmatpush2.msra.mxu0 0.0
        %559 = vmatprep.subr.mxu0 0.0
        %560 = vmatpush2.msra.mxu0 0.0
        %561 = vmatprep.subr.mxu0 0.0
        %562 = vmatpush2.msra.mxu0 0.0
        %563 = vmatprep.subr.mxu0 0.0
        %564 = vmatpush2.msra.mxu0 0.0
        %565 = vmatprep.subr.mxu0 0.0
        %566 = vmatpush2.msra.mxu0 0.0
        %567 = vmatprep.subr.mxu0 0.0
        %568 = vmatpush2.msra.mxu0 0.0
        %569 = vmatprep.subr.mxu0 0.0
        %570 = vmatpush2.msra.mxu0 0.0
        %571 = vmatprep.subr.mxu0 0.0
        %572 = vmatpush2.msra.mxu0 0.0
        %573 = vmatprep.mubr.f32.mxu0 0.0
        %574 = vmatmul.mubr.f32.gmra.mxu0 %v504
        %v575 = vpop.f32.mrf.mxu0
        %v576 = vadd.f32 %v417, %v575
        %v577 = vpop.f32.mrf.mxu0
        %578 = vmatprep.mubr.f32.mxu0 0.0
        %579 = vmatmul.mubr.f32.gmra.mxu0 %v507
        %v580 = vpop.f32.mrf.mxu0
        %v581 = vadd.f32 %v423, %v580
        %v582 = vpop.f32.mrf.mxu0
        %583 = vdwg.mxu0
        %s584 = scalar_lea.vmem [#allocation7], 32
        %v585 = vld [vmem:[%s584] sm:$0xff]
        %v586 = vld [vmem:[%s584 + $0x8] sm:$0xff]
        %v588 = vsel %vm502, %v585, 0
        %v591 = vsel %vm502, %v586, 0
        %593 = vmatprep.subr.mxu0 0.0
        %594 = vmatpush1.msra.mxu0 0.0
        %595 = vmatprep.subr.mxu0 0.0
        %596 = vmatpush1.msra.mxu0 0.0
        %597 = vmatprep.subr.mxu0 0.0
        %598 = vmatpush1.msra.mxu0 0.0
        %599 = vmatprep.subr.mxu0 0.0
        %600 = vmatpush1.msra.mxu0 0.0
        %601 = vmatprep.subr.mxu0 0.0
        %602 = vmatpush1.msra.mxu0 0.0
        %603 = vmatprep.subr.mxu0 0.0
        %604 = vmatpush1.msra.mxu0 0.0
        %605 = vmatprep.subr.mxu0 0.0
        %606 = vmatpush1.msra.mxu0 0.0
        %607 = vmatprep.subr.mxu0 0.0
        %608 = vmatpush1.msra.mxu0 0.0
        %609 = vmatprep.subr.mxu0 0.0
        %610 = vmatpush1.msra.mxu0 0.0
        %611 = vmatprep.subr.mxu0 0.0
        %612 = vmatpush1.msra.mxu0 0.0
        %613 = vmatprep.subr.mxu0 0.0
        %614 = vmatpush1.msra.mxu0 0.0
        %615 = vmatprep.subr.mxu0 0.0
        %616 = vmatpush1.msra.mxu0 0.0
        %617 = vmatprep.subr.mxu0 0.0
        %618 = vmatpush1.msra.mxu0 0.0
        %619 = vmatprep.subr.mxu0 0.0
        %620 = vmatpush1.msra.mxu0 0.0
        %621 = vmatprep.subr.mxu0 0.0
        %622 = vmatpush1.msra.mxu0 %v497
        %623 = vmatprep.subr.mxu0 0.0
        %624 = vmatpush1.msra.mxu0 %v492
        %625 = vmatprep.subr.mxu0 0.0
        %626 = vmatpush2.msra.mxu0 0.0
        %627 = vmatprep.subr.mxu0 0.0
        %628 = vmatpush2.msra.mxu0 0.0
        %629 = vmatprep.subr.mxu0 0.0
        %630 = vmatpush2.msra.mxu0 0.0
        %631 = vmatprep.subr.mxu0 0.0
        %632 = vmatpush2.msra.mxu0 0.0
        %633 = vmatprep.subr.mxu0 0.0
        %634 = vmatpush2.msra.mxu0 0.0
        %635 = vmatprep.subr.mxu0 0.0
        %636 = vmatpush2.msra.mxu0 0.0
        %637 = vmatprep.subr.mxu0 0.0
        %638 = vmatpush2.msra.mxu0 0.0
        %639 = vmatprep.subr.mxu0 0.0
        %640 = vmatpush2.msra.mxu0 0.0
        %641 = vmatprep.subr.mxu0 0.0
        %642 = vmatpush2.msra.mxu0 0.0
        %643 = vmatprep.subr.mxu0 0.0
        %644 = vmatpush2.msra.mxu0 0.0
        %645 = vmatprep.subr.mxu0 0.0
        %646 = vmatpush2.msra.mxu0 0.0
        %647 = vmatprep.subr.mxu0 0.0
        %648 = vmatpush2.msra.mxu0 0.0
        %649 = vmatprep.subr.mxu0 0.0
        %650 = vmatpush2.msra.mxu0 0.0
        %651 = vmatprep.subr.mxu0 0.0
        %652 = vmatpush2.msra.mxu0 0.0
        %653 = vmatprep.subr.mxu0 0.0
        %654 = vmatpush2.msra.mxu0 0.0
        %655 = vmatprep.subr.mxu0 0.0
        %656 = vmatpush2.msra.mxu0 0.0
        %657 = vmatprep.mubr.f32.mxu0 0.0
        %658 = vmatmul.mubr.f32.gmra.mxu0 %v588
        %v659 = vpop.f32.mrf.mxu0
        %v660 = vadd.f32 0.0, %v659
        %v661 = vpop.f32.mrf.mxu0
        %662 = vmatprep.mubr.f32.mxu0 0.0
        %663 = vmatmul.mubr.f32.gmra.mxu0 %v591
        %v664 = vpop.f32.mrf.mxu0
        %v665 = vadd.f32 0.0, %v664
        %v666 = vpop.f32.mrf.mxu0
        %667 = vdwg.mxu0
        %v668 = vadd.f32 %v576, %v660
        %v669 = vadd.f32 %v581, %v665
        %v671 = vlaneseq
        %v672 = vshrl.u32 %v671, 7
        %v673 = vsub.s32 0, %v672
        %v674 = vrot.slane %v340, %v673
        %v676 = vadd.f32 %v668, %v674
        %v677 = vadd.f32 %v669, %v674
        %vm678 = vcmp.ge.f32.partialorder %v676, 0.0
        %vm679 = vcmp.ge.f32.partialorder %v677, 0.0
        %v680 = vmul.f32 %v676, 0.2
        %v681 = vmul.f32 %v677, 0.2
        %v682 = vsel %vm678, %v676, %v680
        %v683 = vsel %vm679, %v677, %v681
        %v684 = vld [vmem:[#allocation8] sm:$0xff]
        %v685 = vld [vmem:[#allocation8 + $0x8] sm:$0xff]
        %v686 = vld [vmem:[#allocation8 + $0x10] sm:$0xff]
        %v687 = vld [vmem:[#allocation8 + $0x18] sm:$0xff]
        %v688 = vld [vmem:[#allocation8 + $0x20] sm:$0xff]
        %v689 = vld [vmem:[#allocation8 + $0x28] sm:$0xff]
        %v690 = vld [vmem:[#allocation8 + $0x30] sm:$0xff]
        %v691 = vld [vmem:[#allocation8 + $0x38] sm:$0xff]
        %v692 = vld [vmem:[#allocation8 + $0x40] sm:$0xff]
        %v693 = vld [vmem:[#allocation8 + $0x48] sm:$0xff]
        %v694 = vld [vmem:[#allocation8 + $0x50] sm:$0xff]
        %v695 = vld [vmem:[#allocation8 + $0x58] sm:$0xff]
        %v696 = vld [vmem:[#allocation8 + $0x60] sm:$0xff]
        %v697 = vld [vmem:[#allocation8 + $0x68] sm:$0xff]
        %v698 = vld [vmem:[#allocation8 + $0x70] sm:$0xff]
        %v699 = vld [vmem:[#allocation8 + $0x78] sm:$0xff]
        %v700 = vld [vmem:[#allocation8 + $0x80] sm:$0xff]
        %v701 = vld [vmem:[#allocation8 + $0x88] sm:$0xff]
        %v702 = vld [vmem:[#allocation8 + $0x90] sm:$0xff]
        %v703 = vld [vmem:[#allocation8 + $0x98] sm:$0xff]
        %v704 = vld [vmem:[#allocation8 + $0xa0] sm:$0xff]
        %v705 = vld [vmem:[#allocation8 + $0xa8] sm:$0xff]
        %v706 = vld [vmem:[#allocation8 + $0xb0] sm:$0xff]
        %v707 = vld [vmem:[#allocation8 + $0xb8] sm:$0xff]
        %v708 = vld [vmem:[#allocation8 + $0xc0] sm:$0xff]
        %v709 = vld [vmem:[#allocation8 + $0xc8] sm:$0xff]
        %v710 = vld [vmem:[#allocation8 + $0xd0] sm:$0xff]
        %v711 = vld [vmem:[#allocation8 + $0xd8] sm:$0xff]
        %v712 = vld [vmem:[#allocation8 + $0xe0] sm:$0xff]
        %v713 = vld [vmem:[#allocation8 + $0xe8] sm:$0xff]
        %v714 = vld [vmem:[#allocation8 + $0xf0] sm:$0xff]
        %v715 = vld [vmem:[#allocation8 + $0xf8] sm:$0xff]
        %v716 = vld [vmem:[#allocation8 + $0x100] sm:$0xff]
        %v717 = vld [vmem:[#allocation8 + $0x108] sm:$0xff]
        %v718 = vld [vmem:[#allocation8 + $0x110] sm:$0xff]
        %v719 = vld [vmem:[#allocation8 + $0x118] sm:$0xff]
        %v720 = vld [vmem:[#allocation8 + $0x120] sm:$0xff]
        %v721 = vld [vmem:[#allocation8 + $0x128] sm:$0xff]
        %v722 = vld [vmem:[#allocation8 + $0x130] sm:$0xff]
        %v723 = vld [vmem:[#allocation8 + $0x138] sm:$0xff]
        %v724 = vld [vmem:[#allocation8 + $0x140] sm:$0xff]
        %v725 = vld [vmem:[#allocation8 + $0x148] sm:$0xff]
        %v726 = vld [vmem:[#allocation8 + $0x150] sm:$0xff]
        %v727 = vld [vmem:[#allocation8 + $0x158] sm:$0xff]
        %v728 = vld [vmem:[#allocation8 + $0x160] sm:$0xff]
        %v729 = vld [vmem:[#allocation8 + $0x168] sm:$0xff]
        %v730 = vld [vmem:[#allocation8 + $0x170] sm:$0xff]
        %v731 = vld [vmem:[#allocation8 + $0x178] sm:$0xff]
        %v732 = vld [vmem:[%s5] sm:$0x1]
        %733 = vmatprep.subr.mxu0 %v730
        %734 = vmatpush1.msra.mxu0 %v729
        %735 = vmatprep.subr.mxu0 %v727
        %736 = vmatpush1.msra.mxu0 %v726
        %737 = vmatprep.subr.mxu0 %v724
        %738 = vmatpush1.msra.mxu0 %v723
        %739 = vmatprep.subr.mxu0 %v721
        %740 = vmatpush1.msra.mxu0 %v720
        %741 = vmatprep.subr.mxu0 %v718
        %742 = vmatpush1.msra.mxu0 %v717
        %743 = vmatprep.subr.mxu0 %v715
        %744 = vmatpush1.msra.mxu0 %v714
        %745 = vmatprep.subr.mxu0 %v712
        %746 = vmatpush1.msra.mxu0 %v711
        %747 = vmatprep.subr.mxu0 %v709
        %748 = vmatpush1.msra.mxu0 %v708
        %749 = vmatprep.subr.mxu0 %v706
        %750 = vmatpush1.msra.mxu0 %v705
        %751 = vmatprep.subr.mxu0 %v703
        %752 = vmatpush1.msra.mxu0 %v702
        %753 = vmatprep.subr.mxu0 %v700
        %754 = vmatpush1.msra.mxu0 %v699
        %755 = vmatprep.subr.mxu0 %v697
        %756 = vmatpush1.msra.mxu0 %v696
        %757 = vmatprep.subr.mxu0 %v694
        %758 = vmatpush1.msra.mxu0 %v693
        %759 = vmatprep.subr.mxu0 %v691
        %760 = vmatpush1.msra.mxu0 %v690
        %761 = vmatprep.subr.mxu0 %v688
        %762 = vmatpush1.msra.mxu0 %v687
        %763 = vmatprep.subr.mxu0 %v685
        %764 = vmatpush1.msra.mxu0 %v684
        %765 = vmatprep.subr.mxu0 0.0
        %766 = vmatpush2.msra.mxu0 0.0
        %767 = vmatprep.subr.mxu0 0.0
        %768 = vmatpush2.msra.mxu0 0.0
        %769 = vmatprep.subr.mxu0 0.0
        %770 = vmatpush2.msra.mxu0 0.0
        %771 = vmatprep.subr.mxu0 0.0
        %772 = vmatpush2.msra.mxu0 0.0
        %773 = vmatprep.subr.mxu0 0.0
        %774 = vmatpush2.msra.mxu0 0.0
        %775 = vmatprep.subr.mxu0 0.0
        %776 = vmatpush2.msra.mxu0 0.0
        %777 = vmatprep.subr.mxu0 0.0
        %778 = vmatpush2.msra.mxu0 0.0
        %779 = vmatprep.subr.mxu0 0.0
        %780 = vmatpush2.msra.mxu0 0.0
        %781 = vmatprep.subr.mxu0 0.0
        %782 = vmatpush2.msra.mxu0 0.0
        %783 = vmatprep.subr.mxu0 0.0
        %784 = vmatpush2.msra.mxu0 0.0
        %785 = vmatprep.subr.mxu0 0.0
        %786 = vmatpush2.msra.mxu0 0.0
        %787 = vmatprep.subr.mxu0 0.0
        %788 = vmatpush2.msra.mxu0 0.0
        %789 = vmatprep.subr.mxu0 0.0
        %790 = vmatpush2.msra.mxu0 0.0
        %791 = vmatprep.subr.mxu0 0.0
        %792 = vmatpush2.msra.mxu0 0.0
        %793 = vmatprep.subr.mxu0 0.0
        %794 = vmatpush2.msra.mxu0 0.0
        %795 = vmatprep.subr.mxu0 0.0
        %796 = vmatpush2.msra.mxu0 0.0
        %797 = vmatprep.mubr.f32.mxu0 0.0
        %798 = vmatmul.mubr.f32.gmra.mxu0 %v682
        %v799 = vpop.f32.mrf.mxu0
        %v800 = vadd.f32 0.0, %v799
        %v801 = vpop.f32.mrf.mxu0
        %v802 = vadd.f32 0.0, %v801
        %803 = vmatprep.mubr.f32.mxu0 0.0
        %804 = vmatmul.mubr.f32.gmra.mxu0 %v683
        %v805 = vpop.f32.mrf.mxu0
        %v806 = vadd.f32 0.0, %v805
        %v807 = vpop.f32.mrf.mxu0
        %v808 = vadd.f32 0.0, %v807
        %809 = vdwg.mxu0
        %810 = vmatprep.subr.mxu0 0.0
        %811 = vmatpush1.msra.mxu0 %v731
        %812 = vmatprep.subr.mxu0 0.0
        %813 = vmatpush1.msra.mxu0 %v728
        %814 = vmatprep.subr.mxu0 0.0
        %815 = vmatpush1.msra.mxu0 %v725
        %816 = vmatprep.subr.mxu0 0.0
        %817 = vmatpush1.msra.mxu0 %v722
        %818 = vmatprep.subr.mxu0 0.0
        %819 = vmatpush1.msra.mxu0 %v719
        %820 = vmatprep.subr.mxu0 0.0
        %821 = vmatpush1.msra.mxu0 %v716
        %822 = vmatprep.subr.mxu0 0.0
        %823 = vmatpush1.msra.mxu0 %v713
        %824 = vmatprep.subr.mxu0 0.0
        %825 = vmatpush1.msra.mxu0 %v710
        %826 = vmatprep.subr.mxu0 0.0
        %827 = vmatpush1.msra.mxu0 %v707
        %828 = vmatprep.subr.mxu0 0.0
        %829 = vmatpush1.msra.mxu0 %v704
        %830 = vmatprep.subr.mxu0 0.0
        %831 = vmatpush1.msra.mxu0 %v701
        %832 = vmatprep.subr.mxu0 0.0
        %833 = vmatpush1.msra.mxu0 %v698
        %834 = vmatprep.subr.mxu0 0.0
        %835 = vmatpush1.msra.mxu0 %v695
        %836 = vmatprep.subr.mxu0 0.0
        %837 = vmatpush1.msra.mxu0 %v692
        %838 = vmatprep.subr.mxu0 0.0
        %839 = vmatpush1.msra.mxu0 %v689
        %840 = vmatprep.subr.mxu0 0.0
        %841 = vmatpush1.msra.mxu0 %v686
        %842 = vmatprep.subr.mxu0 0.0
        %843 = vmatpush2.msra.mxu0 0.0
        %844 = vmatprep.subr.mxu0 0.0
        %845 = vmatpush2.msra.mxu0 0.0
        %846 = vmatprep.subr.mxu0 0.0
        %847 = vmatpush2.msra.mxu0 0.0
        %848 = vmatprep.subr.mxu0 0.0
        %849 = vmatpush2.msra.mxu0 0.0
        %850 = vmatprep.subr.mxu0 0.0
        %851 = vmatpush2.msra.mxu0 0.0
        %852 = vmatprep.subr.mxu0 0.0
        %853 = vmatpush2.msra.mxu0 0.0
        %854 = vmatprep.subr.mxu0 0.0
        %855 = vmatpush2.msra.mxu0 0.0
        %856 = vmatprep.subr.mxu0 0.0
        %857 = vmatpush2.msra.mxu0 0.0
        %858 = vmatprep.subr.mxu0 0.0
        %859 = vmatpush2.msra.mxu0 0.0
        %860 = vmatprep.subr.mxu0 0.0
        %861 = vmatpush2.msra.mxu0 0.0
        %862 = vmatprep.subr.mxu0 0.0
        %863 = vmatpush2.msra.mxu0 0.0
        %864 = vmatprep.subr.mxu0 0.0
        %865 = vmatpush2.msra.mxu0 0.0
        %866 = vmatprep.subr.mxu0 0.0
        %867 = vmatpush2.msra.mxu0 0.0
        %868 = vmatprep.subr.mxu0 0.0
        %869 = vmatpush2.msra.mxu0 0.0
        %870 = vmatprep.subr.mxu0 0.0
        %871 = vmatpush2.msra.mxu0 0.0
        %872 = vmatprep.subr.mxu0 0.0
        %873 = vmatpush2.msra.mxu0 0.0
        %874 = vmatprep.mubr.f32.mxu0 0.0
        %875 = vmatmul.mubr.f32.gmra.mxu0 %v682
        %v876 = vpop.f32.mrf.mxu0
        %v877 = vadd.f32 0.0, %v876
        %v878 = vpop.f32.mrf.mxu0
        %879 = vmatprep.mubr.f32.mxu0 0.0
        %880 = vmatmul.mubr.f32.gmra.mxu0 %v683
        %v881 = vpop.f32.mrf.mxu0
        %v882 = vadd.f32 0.0, %v881
        %v883 = vpop.f32.mrf.mxu0
        %884 = vdwg.mxu0
        %885 = vmatprep.subr.mxu0 0.0
        %886 = vmatpush1.msra.mxu0 0.0
        %887 = vmatprep.subr.mxu0 0.0
        %888 = vmatpush1.msra.mxu0 0.0
        %889 = vmatprep.subr.mxu0 0.0
        %890 = vmatpush1.msra.mxu0 0.0
        %891 = vmatprep.subr.mxu0 0.0
        %892 = vmatpush1.msra.mxu0 0.0
        %893 = vmatprep.subr.mxu0 0.0
        %894 = vmatpush1.msra.mxu0 0.0
        %895 = vmatprep.subr.mxu0 0.0
        %896 = vmatpush1.msra.mxu0 0.0
        %897 = vmatprep.subr.mxu0 0.0
        %898 = vmatpush1.msra.mxu0 0.0
        %899 = vmatprep.subr.mxu0 0.0
        %900 = vmatpush1.msra.mxu0 0.0
        %901 = vmatprep.subr.mxu0 0.0
        %902 = vmatpush1.msra.mxu0 0.0
        %903 = vmatprep.subr.mxu0 0.0
        %904 = vmatpush1.msra.mxu0 0.0
        %905 = vmatprep.subr.mxu0 0.0
        %906 = vmatpush1.msra.mxu0 0.0
        %907 = vmatprep.subr.mxu0 0.0
        %908 = vmatpush1.msra.mxu0 0.0
        %909 = vmatprep.subr.mxu0 0.0
        %910 = vmatpush1.msra.mxu0 0.0
        %911 = vmatprep.subr.mxu0 0.0
        %912 = vmatpush1.msra.mxu0 0.0
        %913 = vmatprep.subr.mxu0 0.0
        %914 = vmatpush1.msra.mxu0 %v806
        %915 = vmatprep.subr.mxu0 0.0
        %916 = vmatpush1.msra.mxu0 %v800
        %917 = vmatprep.subr.mxu0 0.0
        %918 = vmatpush2.msra.mxu0 0.0
        %919 = vmatprep.subr.mxu0 0.0
        %920 = vmatpush2.msra.mxu0 0.0
        %921 = vmatprep.subr.mxu0 0.0
        %922 = vmatpush2.msra.mxu0 0.0
        %923 = vmatprep.subr.mxu0 0.0
        %924 = vmatpush2.msra.mxu0 0.0
        %925 = vmatprep.subr.mxu0 0.0
        %926 = vmatpush2.msra.mxu0 0.0
        %927 = vmatprep.subr.mxu0 0.0
        %928 = vmatpush2.msra.mxu0 0.0
        %929 = vmatprep.subr.mxu0 0.0
        %930 = vmatpush2.msra.mxu0 0.0
        %931 = vmatprep.subr.mxu0 0.0
        %932 = vmatpush2.msra.mxu0 0.0
        %933 = vmatprep.subr.mxu0 0.0
        %934 = vmatpush2.msra.mxu0 0.0
        %935 = vmatprep.subr.mxu0 0.0
        %936 = vmatpush2.msra.mxu0 0.0
        %937 = vmatprep.subr.mxu0 0.0
        %938 = vmatpush2.msra.mxu0 0.0
        %939 = vmatprep.subr.mxu0 0.0
        %940 = vmatpush2.msra.mxu0 0.0
        %941 = vmatprep.subr.mxu0 0.0
        %942 = vmatpush2.msra.mxu0 0.0
        %943 = vmatprep.subr.mxu0 0.0
        %944 = vmatpush2.msra.mxu0 0.0
        %945 = vmatprep.subr.mxu0 0.0
        %946 = vmatpush2.msra.mxu0 0.0
        %947 = vmatprep.subr.mxu0 0.0
        %948 = vmatpush2.msra.mxu0 0.0
        %949 = vmatprep.mubr.f32.mxu0 0.0
        %950 = vmatmul.mubr.f32.gmra.mxu0 %v504
        %v951 = vpop.f32.mrf.mxu0
        %v952 = vadd.f32 %v802, %v951
        %v953 = vpop.f32.mrf.mxu0
        %954 = vmatprep.mubr.f32.mxu0 0.0
        %955 = vmatmul.mubr.f32.gmra.mxu0 %v507
        %v956 = vpop.f32.mrf.mxu0
        %v957 = vadd.f32 %v808, %v956
        %v958 = vpop.f32.mrf.mxu0
        %959 = vdwg.mxu0
        %960 = vmatprep.subr.mxu0 0.0
        %961 = vmatpush1.msra.mxu0 0.0
        %962 = vmatprep.subr.mxu0 0.0
        %963 = vmatpush1.msra.mxu0 0.0
        %964 = vmatprep.subr.mxu0 0.0
        %965 = vmatpush1.msra.mxu0 0.0
        %966 = vmatprep.subr.mxu0 0.0
        %967 = vmatpush1.msra.mxu0 0.0
        %968 = vmatprep.subr.mxu0 0.0
        %969 = vmatpush1.msra.mxu0 0.0
        %970 = vmatprep.subr.mxu0 0.0
        %971 = vmatpush1.msra.mxu0 0.0
        %972 = vmatprep.subr.mxu0 0.0
        %973 = vmatpush1.msra.mxu0 0.0
        %974 = vmatprep.subr.mxu0 0.0
        %975 = vmatpush1.msra.mxu0 0.0
        %976 = vmatprep.subr.mxu0 0.0
        %977 = vmatpush1.msra.mxu0 0.0
        %978 = vmatprep.subr.mxu0 0.0
        %979 = vmatpush1.msra.mxu0 0.0
        %980 = vmatprep.subr.mxu0 0.0
        %981 = vmatpush1.msra.mxu0 0.0
        %982 = vmatprep.subr.mxu0 0.0
        %983 = vmatpush1.msra.mxu0 0.0
        %984 = vmatprep.subr.mxu0 0.0
        %985 = vmatpush1.msra.mxu0 0.0
        %986 = vmatprep.subr.mxu0 0.0
        %987 = vmatpush1.msra.mxu0 0.0
        %988 = vmatprep.subr.mxu0 0.0
        %989 = vmatpush1.msra.mxu0 %v882
        %990 = vmatprep.subr.mxu0 0.0
        %991 = vmatpush1.msra.mxu0 %v877
        %992 = vmatprep.subr.mxu0 0.0
        %993 = vmatpush2.msra.mxu0 0.0
        %994 = vmatprep.subr.mxu0 0.0
        %995 = vmatpush2.msra.mxu0 0.0
        %996 = vmatprep.subr.mxu0 0.0
        %997 = vmatpush2.msra.mxu0 0.0
        %998 = vmatprep.subr.mxu0 0.0
        %999 = vmatpush2.msra.mxu0 0.0
        %1000 = vmatprep.subr.mxu0 0.0
        %1001 = vmatpush2.msra.mxu0 0.0
        %1002 = vmatprep.subr.mxu0 0.0
        %1003 = vmatpush2.msra.mxu0 0.0
        %1004 = vmatprep.subr.mxu0 0.0
        %1005 = vmatpush2.msra.mxu0 0.0
        %1006 = vmatprep.subr.mxu0 0.0
        %1007 = vmatpush2.msra.mxu0 0.0
        %1008 = vmatprep.subr.mxu0 0.0
        %1009 = vmatpush2.msra.mxu0 0.0
        %1010 = vmatprep.subr.mxu0 0.0
        %1011 = vmatpush2.msra.mxu0 0.0
        %1012 = vmatprep.subr.mxu0 0.0
        %1013 = vmatpush2.msra.mxu0 0.0
        %1014 = vmatprep.subr.mxu0 0.0
        %1015 = vmatpush2.msra.mxu0 0.0
        %1016 = vmatprep.subr.mxu0 0.0
        %1017 = vmatpush2.msra.mxu0 0.0
        %1018 = vmatprep.subr.mxu0 0.0
        %1019 = vmatpush2.msra.mxu0 0.0
        %1020 = vmatprep.subr.mxu0 0.0
        %1021 = vmatpush2.msra.mxu0 0.0
        %1022 = vmatprep.subr.mxu0 0.0
        %1023 = vmatpush2.msra.mxu0 0.0
        %1024 = vmatprep.mubr.f32.mxu0 0.0
        %1025 = vmatmul.mubr.f32.gmra.mxu0 %v588
        %v1026 = vpop.f32.mrf.mxu0
        %v1027 = vadd.f32 0.0, %v1026
        %v1028 = vpop.f32.mrf.mxu0
        %1029 = vmatprep.mubr.f32.mxu0 0.0
        %1030 = vmatmul.mubr.f32.gmra.mxu0 %v591
        %v1031 = vpop.f32.mrf.mxu0
        %v1032 = vadd.f32 0.0, %v1031
        %v1033 = vpop.f32.mrf.mxu0
        %1034 = vdwg.mxu0
        %v1035 = vadd.f32 %v952, %v1027
        %v1036 = vadd.f32 %v957, %v1032
        %v1038 = vlaneseq
        %v1039 = vshrl.u32 %v1038, 7
        %v1040 = vsub.s32 0, %v1039
        %v1041 = vrot.slane %v732, %v1040
        %v1043 = vadd.f32 %v1035, %v1041
        %v1044 = vadd.f32 %v1036, %v1041
        %vm1045 = vcmp.ge.f32.partialorder %v1043, 0.0
        %vm1046 = vcmp.ge.f32.partialorder %v1044, 0.0
        %v1047 = vmul.f32 %v1043, 0.2
        %v1048 = vmul.f32 %v1044, 0.2
        %v1049 = vsel %vm1045, %v1043, %v1047
        %v1050 = vsel %vm1046, %v1044, %v1048
        %1051 = vst [vmem:[%s313] sm:$0xff] %v1049
        %1052 = vst [vmem:[%s313 + $0x8] sm:$0xff] %v1050
        %s1053 = sand.u32 %s164, 1
        %s1054 = scalar_lea.sflag [#allocation4], %s1053
        %s1055 = sand.u32 %s164, 1
        %s1056 = smul.addr %s1055, 16
        %s1057 = scalar_lea.vmem [#allocation10], %s1056
        // Predicated region
        $region61: #{tpu_custom_call.1} parent=43 // pred_check
          %p1058 = pneg %p174
        $region62: #{tpu_custom_call.1} parent=43 // pred_check_branch
          %1060 = sbr.rel (%p1058) target = $region64
        $region63: #{tpu_custom_call.1} parent=43 // pred_region
          %s1062 = ssub.s32 256, 256
          %1063 = vsyncadd %s1054, %s1062
          %s1064 = smul.addr %s25, 2
          %s1065 = smul.addr %s1064, 128
          %s1066 = scalar_lea.hbm %s6, %s1065
          %s1067 = sshll.u32 %s1057, 4
          %s1068 = int_to_ptr.vmem [resolvable:$true] %s1067
          %1073 = dma.vmem_to_hbm [thread:$0]  %s1068, 256, %s1066, %s1054, 128, 128, 8
        $region64: #{tpu_custom_call.1} parent=43 // pred_fallthru
          _
      $region44: #{tpu_custom_call.1} parent=5 // pred_fallthru
        _
      %p1074 = scmp.le.s32.totalorder 2, %s20
      // Predicated region
      $region65: #{tpu_custom_call.1} parent=5 // pred_check
        %p1075 = pneg %p1074
      $region66: #{tpu_custom_call.1} parent=5 // pred_check_branch
        %1077 = sbr.rel (%p1075) target = $region68
      $region67: #{tpu_custom_call.1} parent=5 // pred_region
        %s1078 = ssub.s32 %s20, 2
        // Predicated region
        $region69: #{tpu_custom_call.1} parent=67 // pred_check
          %p1079 = pneg %p180
        $region70: #{tpu_custom_call.1} parent=67 // pred_check_branch
          %1081 = sbr.rel (%p1079) target = $region72
        $region71: #{tpu_custom_call.1} parent=67 // pred_region
          %s1082 = sand.u32 %s165, 1
          %s1083 = scalar_lea.sflag [#allocation4], %s1082
          %s1084 = sand.u32 %s165, 1
          %s1085 = smul.addr %s1084, 16
          %s1086 = scalar_lea.vmem [#allocation10], %s1085
          %1087 = dma.done %s1083, 256
        $region72: #{tpu_custom_call.1} parent=67 // pred_fallthru
          _
      $region68: #{tpu_custom_call.1} parent=5 // pred_fallthru
        _
    $region6: #{tpu_custom_call.1} parent=1 // loop_footer
      %s24 = sadd.s32 1, %s20
    $region7: #{tpu_custom_call.1} parent=1 // loop_footer_branch
      %19 = sbr.rel target = $region3
    $region8: #{tpu_custom_call.1} parent=1 // loop_exit
      _
    %1088 = vsyncpa [#allocation3], 1
    %s1089 = scalar_lea.sflag [#allocation3], 1
    %1090 = vsyncpa %s1089, 1
    %1091 = vsyncpa [#allocation6], 1
    %1092 = vsyncpa [#allocation9], 1
    %1093 = vsyncpa [#allocation4], 1
    %s1094 = scalar_lea.sflag [#allocation4], 1
    %1095 = vsyncpa %s1094, 1

</llo_original>
